<compile_context>
chip_gen: v6e
topology: v6e:2x2x1
jax: 0.10.0
libtpu: 0.0.40
codegen_flags: <defaults>
</compile_context>

<pallas_src>
import functools

import jax
import jax.numpy as jnp
from jax.experimental import pallas as pl
from jax.experimental.pallas import tpu as pltpu


def _round_up(v, m):
    return (v + m - 1) // m * m


def _vmem_capacity_bytes():
    """Generation-aware VMEM capacity (fallback: 64 MiB = v7x per-TensorCore)."""
    try:
        info = pltpu.get_tpu_info()
        cap = getattr(info, "vmem_capacity_bytes", None)
        if cap:
            return int(cap)
    except Exception:
        pass
    return 64 * 1024 * 1024


_VMEM_CAP = _vmem_capacity_bytes()
_PATH_A_VMEM_BUDGET = (_VMEM_CAP * 5) // 8   # 40 MiB on v7x, 80 MiB on v5e/v6e
_VMEM_LIMIT_BYTES = (_VMEM_CAP * 3) // 4     # 48 MiB on v7x, 96 MiB on v5e/v6e


# --------------------------------------------------------------------------
# Parameter preparation (runs ONCE, outside the per-call hot path):
#   - pad K (D_in) and N (D_out) to the tile grid
#   - cast the weight to bf16 (MXU feed), keep bias f32
# --------------------------------------------------------------------------
def _choose_kn_tiles(d_in, d_out):
    tk = 512 if d_in >= 512 else _round_up(d_in, 128)
    tn = 512 if d_out >= 512 else _round_up(d_out, 128)
    return tk, tn


def prepare_textnn_params(w_t, b):
    """w_t: [D_in, D_out] f32 (transposed PyTorch Linear weight); b: [D_out]."""
    w_t = jnp.asarray(w_t, jnp.float32)
    d_in, d_out = w_t.shape
    b = jnp.asarray(b, jnp.float32).reshape(1, d_out)

    tk, tn = _choose_kn_tiles(d_in, d_out)
    dk_pad = _round_up(d_in, tk)
    dn_pad = _round_up(d_out, tn)

    if dk_pad != d_in or dn_pad != d_out:
        w_t = jnp.pad(w_t, ((0, dk_pad - d_in), (0, dn_pad - d_out)))
    if dn_pad != d_out:
        b = jnp.pad(b, ((0, 0), (0, dn_pad - d_out)))

    w_bf16 = w_t.astype(jnp.bfloat16)   # cast once; halves weight HBM traffic
    return w_bf16, b, d_out


# --------------------------------------------------------------------------
# Path A: weight fully resident in VMEM.  Grid = (batch tiles, N splits).
# N is split in half when there is a single batch tile so both v7x TCs work.
# --------------------------------------------------------------------------
def _resident_kernel(x_ref, w_ref, b_ref, o_ref):
    x_bf = x_ref[...].astype(jnp.bfloat16)
    acc = jnp.dot(x_bf, w_ref[...], preferred_element_type=jnp.float32)
    o_ref[...] = jnp.maximum(acc + b_ref[...], 0.0).astype(o_ref.dtype)


def _forward_resident(x, w_pad, b_pad, *, tm):
    b_rows, dk_pad = x.shape
    _, dn_pad = w_pad.shape

    batch_tiles = b_rows // tm
    n_splits = 2 if (batch_tiles == 1 and dn_pad % 256 == 0) else 1
    tn = dn_pad // n_splits

    return pl.pallas_call(
        _resident_kernel,
        out_shape=jax.ShapeDtypeStruct((b_rows, dn_pad), jnp.float32),
        grid_spec=pltpu.PrefetchScalarGridSpec(
            num_scalar_prefetch=0,
            grid=(batch_tiles, n_splits),
            in_specs=[
                pl.BlockSpec((tm, dk_pad), lambda i, j: (i, 0)),   # x batch tile (f32)
                pl.BlockSpec((dk_pad, tn), lambda i, j: (0, j)),   # resident weight (bf16)
                pl.BlockSpec((1, tn), lambda i, j: (0, j)),        # resident bias
            ],
            out_specs=pl.BlockSpec((tm, tn), lambda i, j: (i, j)),
        ),
        compiler_params=pltpu.CompilerParams(
            dimension_semantics=("parallel", "parallel"),
            vmem_limit_bytes=_VMEM_LIMIT_BYTES,
        ),
    )(x, w_pad, b_pad)


# --------------------------------------------------------------------------
# Path B: large weight -> 3-D grid, K-reduction accumulates into the resident
# f32 output block (no scratch accumulator), bias+ReLU fused in the epilogue.
# K/N padding was done once at prep time, so the reduction over zero-padded
# blocks is exact.
# --------------------------------------------------------------------------
def _tiled_kernel(x_ref, w_ref, b_ref, o_ref):
    k = pl.program_id(2)

    @pl.when(k == 0)
    def _():
        o_ref[...] = jnp.zeros_like(o_ref)

    x_bf = x_ref[...].astype(jnp.bfloat16)
    o_ref[...] += jnp.dot(x_bf, w_ref[...], preferred_element_type=jnp.float32)

    @pl.when(k == pl.num_programs(2) - 1)
    def _():
        o_ref[...] = jnp.maximum(o_ref[...] + b_ref[...], 0.0)


def _forward_tiled(x, w_pad, b_pad, *, tm):
    b_rows, dk_pad = x.shape
    _, dn_pad = w_pad.shape

    # Derive tiles from the (already padded) dims; matches prepare_textnn_params.
    tk = 512 if dk_pad % 512 == 0 else dk_pad
    tn = 512 if dn_pad % 512 == 0 else dn_pad
    grid = (b_rows // tm, dn_pad // tn, dk_pad // tk)

    return pl.pallas_call(
        _tiled_kernel,
        out_shape=jax.ShapeDtypeStruct((b_rows, dn_pad), jnp.float32),
        grid_spec=pltpu.PrefetchScalarGridSpec(
            num_scalar_prefetch=0,
            grid=grid,
            in_specs=[
                pl.BlockSpec((tm, tk), lambda i, j, k: (i, k)),    # x tile (f32)
                pl.BlockSpec((tk, tn), lambda i, j, k: (k, j)),    # weight tile (bf16)
                pl.BlockSpec((1, tn), lambda i, j, k: (0, j)),     # bias tile
            ],
            out_specs=pl.BlockSpec((tm, tn), lambda i, j, k: (i, j)),
        ),
        compiler_params=pltpu.CompilerParams(
            dimension_semantics=("parallel", "parallel", "arbitrary"),
            vmem_limit_bytes=_VMEM_LIMIT_BYTES,
        ),
    )(x, w_pad, b_pad)


# --------------------------------------------------------------------------
# Public forward: relu(x @ w_t + b), with prepared (padded, bf16) parameters.
# --------------------------------------------------------------------------
@functools.partial(jax.jit, static_argnames=("d_out", "force_tiled"))
def _textnn_forward_impl(x, w_pad, b_pad, *, d_out, force_tiled):
    B, d_in = x.shape
    dk_pad, dn_pad = w_pad.shape

    # Batch tile: big enough to feed the MXU / amortize weight streaming; bf16
    # sublane packing => multiple of 16.
    tm = 512 if B >= 512 else _round_up(B, 16)
    b_rows = _round_up(B, tm)

    # Per-call padding touches only the (small) activation, never the weight.
    pad_rows = b_rows - B
    pad_k = dk_pad - d_in
    if pad_rows or pad_k:
        x = jnp.pad(x, ((0, pad_rows), (0, pad_k)))

    # Conservative resident footprint (assumes double-buffered weight/bias).
    bytes_resident = (2 * dk_pad * dn_pad * 2      # bf16 weight, 2 buffers
                      + 2 * dn_pad * 4             # bias
                      + 2 * tm * dk_pad * 4        # f32 x tile
                      + 2 * tm * dn_pad * 4)       # f32 out tile

    if (not force_tiled) and bytes_resident <= _PATH_A_VMEM_BUDGET:
        out = _forward_resident(x, w_pad, b_pad, tm=tm)
    else:
        out = _forward_tiled(x, w_pad, b_pad, tm=tm)

    return out[:B, :d_out]


def make_textnn_forward(w_t, b):
    """Build forward(x) = relu(x @ w_t + b). Pads/casts params once, outside jit."""
    w_pad, b_pad, d_out = prepare_textnn_params(w_t, b)

    def forward(x):
        return _textnn_forward_impl(x, w_pad, b_pad, d_out=d_out, force_tiled=False)

    return forward


if __name__ == "__main__":
    key = jax.random.PRNGKey(0)

    # (B, D_in, D_out, force_tiled):
    #   1) tiny demo shapes       -> resident path, single grid point
    #   2) module default dims    -> resident path, N split across 2 parallel blocks
    #   3) ragged, forced Path B  -> exercises tiled K-accumulation + epilogue
    configs = [
        (8, 256, 128, False),
        (16, 1024, 1024, False),
        (48, 640, 384, True),
    ]

    for idx, (B, D_IN, D_OUT, force_tiled) in enumerate(configs):
        key, kx, kw, kb = jax.random.split(key, 4)
        bound = 1.0 / float(D_IN) ** 0.5
        # PyTorch Linear stores weight as [out, in]; we use the transposed form.
        w_t = jax.random.uniform(kw, (D_IN, D_OUT), jnp.float32, -bound, bound)
        bias = jax.random.uniform(kb, (D_OUT,), jnp.float32, -bound, bound)
        x = jax.random.normal(kx, (B, D_IN), jnp.float32)

        w_pad, b_pad, d_out = prepare_textnn_params(w_t, bias)
        if force_tiled:
            out = _textnn_forward_impl(x, w_pad, b_pad, d_out=d_out, force_tiled=True)
        else:
            forward = make_textnn_forward(w_t, bias)
            out = forward(x)
        out = jax.block_until_ready(out)

        # Reference with matching operand precision (bf16 operands, f32 accumulate).
        ref = jnp.maximum(
            jnp.dot(x.astype(jnp.bfloat16), w_t.astype(jnp.bfloat16),
                    preferred_element_type=jnp.float32) + bias[None, :],
            0.0,
        )
        assert out.shape == (B, D_OUT), (idx, out.shape)
        err = float(jnp.max(jnp.abs(out - ref)))
        assert err < 1e-2, (idx, err)

    print("KERNEL_OK")
</pallas_src>

<mosaic_0001>
module attributes {stable_mosaic.version = 11 : i64} {
  func.func @_resident_kernel(%arg0: i32, %arg1: i32, %arg2: memref<16x256xf32, #tpu.memory_space<vmem>>, %arg3: memref<256x128xbf16, #tpu.memory_space<vmem>>, %arg4: memref<1x128xf32, #tpu.memory_space<vmem>>, %arg5: memref<16x128xf32, #tpu.memory_space<vmem>>) attributes {dimension_semantics = [#tpu.dimension_semantics<parallel>, #tpu.dimension_semantics<parallel>], iteration_bounds = array<i64: 1, 1>, scalar_prefetch = 0 : i64, scratch_operands = 0 : i64, tpu.core_type = #tpu.core_type<tc>, window_params = [{transform_indices = @transform_0, window_bounds = array<i64: 16, 256>}, {transform_indices = @transform_1, window_bounds = array<i64: 256, 128>}, {transform_indices = @transform_2, window_bounds = array<i64: 1, 128>}, {transform_indices = @transform_3, window_bounds = array<i64: 16, 128>}]} {
    %c0 = arith.constant 0 : index
    %c0_0 = arith.constant 0 : index
    %0 = vector.load %arg2[%c0, %c0_0] : memref<16x256xf32, #tpu.memory_space<vmem>>, vector<16x256xf32>
    %1 = arith.truncf %0 : vector<16x256xf32> to vector<16x256xbf16>
    %c0_1 = arith.constant 0 : index
    %c0_2 = arith.constant 0 : index
    %2 = vector.load %arg3[%c0_1, %c0_2] : memref<256x128xbf16, #tpu.memory_space<vmem>>, vector<256x128xbf16>
    %cst = arith.constant dense<0.000000e+00> : vector<16x128xf32>
    %3 = tpu.matmul %1, %2, %cst {dimension_numbers = #tpu.dot_dimension_numbers<[1], [0], [0], [1], [0, 0, 1, 1], [], []>} : vector<16x256xbf16>, vector<256x128xbf16>, vector<16x128xf32> -> vector<16x128xf32>
    %c0_3 = arith.constant 0 : index
    %c0_4 = arith.constant 0 : index
    %4 = vector.load %arg4[%c0_3, %c0_4] : memref<1x128xf32, #tpu.memory_space<vmem>>, vector<1x128xf32>
    %5 = vector.broadcast %4 : vector<1x128xf32> to vector<16x128xf32>
    %6 = arith.addf %3, %5 : vector<16x128xf32>
    %cst_5 = arith.constant 0.000000e+00 : f32
    %7 = vector.broadcast %cst_5 : f32 to vector<16x128xf32>
    %8 = arith.maximumf %6, %7 : vector<16x128xf32>
    %c0_6 = arith.constant 0 : index
    %c0_7 = arith.constant 0 : index
    %9 = vector.load %arg5[%c0_6, %c0_7] : memref<16x128xf32, #tpu.memory_space<vmem>>, vector<16x128xf32>
    tpu.vector_store %arg5[%c0_6, %c0_7], %8 {strides = array<i32>} : memref<16x128xf32, #tpu.memory_space<vmem>>, vector<16x128xf32>,
    return
  }
  func.func @transform_0(%arg0: i32, %arg1: i32) -> (i32, i32) {
    %c0_i32 = arith.constant 0 : i32
    %c0_i32_0 = arith.constant 0 : i32
    return %arg0, %c0_i32 : i32, i32
  }
  func.func @transform_1(%arg0: i32, %arg1: i32) -> (i32, i32) {
    %c0_i32 = arith.constant 0 : i32
    %c0_i32_0 = arith.constant 0 : i32
    return %c0_i32, %arg1 : i32, i32
  }
  func.func @transform_2(%arg0: i32, %arg1: i32) -> (i32, i32) {
    %c0_i32 = arith.constant 0 : i32
    %c0_i32_0 = arith.constant 0 : i32
    return %c0_i32, %arg1 : i32, i32
  }
  func.func @transform_3(%arg0: i32, %arg1: i32) -> (i32, i32) {
    %c0_i32 = arith.constant 0 : i32
    return %arg0, %arg1 : i32, i32
  }
}

</mosaic_0001>

<llo_original>
// kernel: _textnn_forward_impl.1
$region0: #{_textnn_forward_impl.1}
  #allocation0 [shape = 'u32[]', space=smem, size = 0x4, offset = 0x4, fixed_abs, tag = 'smem constant byte address 0x4 - core index']
  #allocation1 [shape = 'u32[144,128]{1,0:T(1,128)}', space=vmem, size = 0x12000, scoped, tag = 'internal scratch']
  %s0 = inlined_call_operand.vmem [shape: f32[16,256], index: 0, kind: input, shape index: {}]
  %s1 = inlined_call_operand.hbm [shape: bf16[256,128], index: 1, kind: input, shape index: {}]
  %s2 = inlined_call_operand.vmem [shape: f32[1,128], index: 2, kind: input, shape index: {}]
  %s3 = inlined_call_operand.vmem [shape: f32[16,128], index: 3, kind: output, shape index: {}]
  %s4 = sld [smem:[#allocation0]]
  $region26: #{_textnn_forward_impl.1} parent=0
    _
  %s6 = ssub.s32 1, %s4
  %s7 = scalar_select 0, %s6, %s4
  $region1: #{_textnn_forward_impl.1} parent=0
    #allocation2 [shape = 'u8[65536]{0}', space=vmem, size = 0x10000, scoped, tag = 'input window, operand 1, single buffered']
    #allocation3 [shape = 's32[1]{0}', space=sflag, size = 0x4, scoped, tag = 'scoped memory for _textnn_forward_impl.1']
    %8 = vsyncpa [#allocation3], 0
    // Predicated region
    $region2: #{_textnn_forward_impl.1} parent=1 // pred_check
      _
    $region3: #{_textnn_forward_impl.1} parent=1 // pred_check_branch
      %10 = sbr.rel (0) target = $region5
    $region4: #{_textnn_forward_impl.1} parent=1 // pred_region
      _
    $region5: #{_textnn_forward_impl.1} parent=1 // pred_fallthru
      _
    // Predicated region
    $region6: #{_textnn_forward_impl.1} parent=1 // pred_check
      _
    $region7: #{_textnn_forward_impl.1} parent=1 // pred_check_branch
      %12 = sbr.rel (0) target = $region9
    $region8: #{_textnn_forward_impl.1} parent=1 // pred_region
      %s14 = ssub.s32 2048, 2048
      %15 = vsyncadd [#allocation3], %s14
      %s16 = sshll.u32 [#allocation2], 4
      %s17 = int_to_ptr.vmem [resolvable:$true] %s16
      %22 = dma.hbm_to_vmem [thread:$0]  %s1, 2048, %s17, [#allocation3], 64, 64, 4
    $region9: #{_textnn_forward_impl.1} parent=1 // pred_fallthru
      _
    // Predicated region
    $region10: #{_textnn_forward_impl.1} parent=1 // pred_check
      _
    $region11: #{_textnn_forward_impl.1} parent=1 // pred_check_branch
      %24 = sbr.rel (0) target = $region13
    $region12: #{_textnn_forward_impl.1} parent=1 // pred_region
      _
    $region13: #{_textnn_forward_impl.1} parent=1 // pred_fallthru
      _
    // Predicated region
    $region14: #{_textnn_forward_impl.1} parent=1 // pred_check
      _
    $region15: #{_textnn_forward_impl.1} parent=1 // pred_check_branch
      %26 = sbr.rel (0) target = $region17
    $region16: #{_textnn_forward_impl.1} parent=1 // pred_region
      %27 = dma.done [#allocation3], 2048
    $region17: #{_textnn_forward_impl.1} parent=1 // pred_fallthru
      _
    %v29 = vld [vmem:[%s0] sm:$0xff]
    %v30 = vld [vmem:[%s0 + $0x8] sm:$0xff]
    %v31 = vld [vmem:[%s0 + $0x10] sm:$0xff]
    %v32 = vld [vmem:[%s0 + $0x18] sm:$0xff]
    %v33 = vpack.c.bf16 %v31, %v29
    %v34 = vpack.c.bf16 %v32, %v30
    %v35 = vld [vmem:[#allocation2] sm:$0xf]
    %v36 = vld [vmem:[#allocation2 + $0x4] sm:$0xf]
    %v37 = vld [vmem:[#allocation2 + $0x8] sm:$0xf]
    %v38 = vld [vmem:[#allocation2 + $0xc] sm:$0xf]
    %v39 = vld [vmem:[#allocation2 + $0x10] sm:$0xf]
    %v40 = vld [vmem:[#allocation2 + $0x14] sm:$0xf]
    %v41 = vld [vmem:[#allocation2 + $0x18] sm:$0xf]
    %v42 = vld [vmem:[#allocation2 + $0x1c] sm:$0xf]
    %v43 = vld [vmem:[#allocation2 + $0x20] sm:$0xf]
    %v44 = vld [vmem:[#allocation2 + $0x24] sm:$0xf]
    %v45 = vld [vmem:[#allocation2 + $0x28] sm:$0xf]
    %v46 = vld [vmem:[#allocation2 + $0x2c] sm:$0xf]
    %v47 = vld [vmem:[#allocation2 + $0x30] sm:$0xf]
    %v48 = vld [vmem:[#allocation2 + $0x34] sm:$0xf]
    %v49 = vld [vmem:[#allocation2 + $0x38] sm:$0xf]
    %v50 = vld [vmem:[#allocation2 + $0x3c] sm:$0xf]
    %v51 = vld [vmem:[#allocation2 + $0x40] sm:$0xf]
    %v52 = vld [vmem:[#allocation2 + $0x44] sm:$0xf]
    %v53 = vld [vmem:[#allocation2 + $0x48] sm:$0xf]
    %v54 = vld [vmem:[#allocation2 + $0x4c] sm:$0xf]
    %v55 = vld [vmem:[#allocation2 + $0x50] sm:$0xf]
    %v56 = vld [vmem:[#allocation2 + $0x54] sm:$0xf]
    %v57 = vld [vmem:[#allocation2 + $0x58] sm:$0xf]
    %v58 = vld [vmem:[#allocation2 + $0x5c] sm:$0xf]
    %v59 = vld [vmem:[#allocation2 + $0x60] sm:$0xf]
    %v60 = vld [vmem:[#allocation2 + $0x64] sm:$0xf]
    %v61 = vld [vmem:[#allocation2 + $0x68] sm:$0xf]
    %v62 = vld [vmem:[#allocation2 + $0x6c] sm:$0xf]
    %v63 = vld [vmem:[#allocation2 + $0x70] sm:$0xf]
    %v64 = vld [vmem:[#allocation2 + $0x74] sm:$0xf]
    %v65 = vld [vmem:[#allocation2 + $0x78] sm:$0xf]
    %v66 = vld [vmem:[#allocation2 + $0x7c] sm:$0xf]
    %v67 = vld [vmem:[%s2] sm:$0x1]
    %v69 = vlaneseq
    %v70 = vshrl.u32 %v69, 7
    %v71 = vsub.s32 0, %v70
    %v72 = vrot.slane %v67, %v71
    %v106 = vunpack.c.l.b16 %v35
    %v107 = vunpack.c.l.b16 %v36
    %v108 = vunpack.c.l.b16 %v37
    %v109 = vunpack.c.l.b16 %v38
    %v110 = vunpack.c.l.b16 %v39
    %v111 = vunpack.c.l.b16 %v40
    %v112 = vunpack.c.l.b16 %v41
    %v113 = vunpack.c.l.b16 %v42
    %v114 = vunpack.c.l.b16 %v43
    %v115 = vunpack.c.l.b16 %v44
    %v116 = vunpack.c.l.b16 %v45
    %v117 = vunpack.c.l.b16 %v46
    %v118 = vunpack.c.l.b16 %v47
    %v119 = vunpack.c.l.b16 %v48
    %v120 = vunpack.c.l.b16 %v49
    %v121 = vunpack.c.l.b16 %v50
    %v122 = vunpack.c.l.b16 %v51
    %v123 = vunpack.c.l.b16 %v52
    %v124 = vunpack.c.l.b16 %v53
    %v125 = vunpack.c.l.b16 %v54
    %v126 = vunpack.c.l.b16 %v55
    %v127 = vunpack.c.l.b16 %v56
    %v128 = vunpack.c.l.b16 %v57
    %v129 = vunpack.c.l.b16 %v58
    %v130 = vunpack.c.l.b16 %v59
    %v131 = vunpack.c.l.b16 %v60
    %v132 = vunpack.c.l.b16 %v61
    %v133 = vunpack.c.l.b16 %v62
    %v134 = vunpack.c.l.b16 %v63
    %v135 = vunpack.c.l.b16 %v64
    %v136 = vunpack.c.l.b16 %v65
    %v137 = vunpack.c.l.b16 %v66
    %v138 = vpack.c.b16 %v107, %v106
    %v139 = vpack.c.b16 %v109, %v108
    %v140 = vpack.c.b16 %v111, %v110
    %v141 = vpack.c.b16 %v113, %v112
    %v142 = vpack.c.b16 %v115, %v114
    %v143 = vpack.c.b16 %v117, %v116
    %v144 = vpack.c.b16 %v119, %v118
    %v145 = vpack.c.b16 %v121, %v120
    %v146 = vpack.c.b16 %v123, %v122
    %v147 = vpack.c.b16 %v125, %v124
    %v148 = vpack.c.b16 %v127, %v126
    %v149 = vpack.c.b16 %v129, %v128
    %v150 = vpack.c.b16 %v131, %v130
    %v151 = vpack.c.b16 %v133, %v132
    %v152 = vpack.c.b16 %v135, %v134
    %v153 = vpack.c.b16 %v137, %v136
    %170 = vmatprep.subr.bf16.mxu0 0
    %171 = vmatpush1.bf16.msra.mxu0 %v145
    %172 = vmatprep.subr.bf16.mxu0 0
    %173 = vmatpush1.bf16.msra.mxu0 %v144
    %174 = vmatprep.subr.bf16.mxu0 0
    %175 = vmatpush1.bf16.msra.mxu0 %v143
    %176 = vmatprep.subr.bf16.mxu0 0
    %177 = vmatpush1.bf16.msra.mxu0 %v142
    %178 = vmatprep.subr.bf16.mxu0 0
    %179 = vmatpush1.bf16.msra.mxu0 %v141
    %180 = vmatprep.subr.bf16.mxu0 0
    %181 = vmatpush1.bf16.msra.mxu0 %v140
    %182 = vmatprep.subr.bf16.mxu0 0
    %183 = vmatpush1.bf16.msra.mxu0 %v139
    %184 = vmatprep.subr.bf16.mxu0 0
    %185 = vmatpush1.bf16.msra.mxu0 %v138
    %186 = vmatprep.subr.bf16.mxu0 0
    %187 = vmatpush2.bf16.msra.mxu0 %v153
    %188 = vmatprep.subr.bf16.mxu0 0
    %189 = vmatpush2.bf16.msra.mxu0 %v152
    %190 = vmatprep.subr.bf16.mxu0 0
    %191 = vmatpush2.bf16.msra.mxu0 %v151
    %192 = vmatprep.subr.bf16.mxu0 0
    %193 = vmatpush2.bf16.msra.mxu0 %v150
    %194 = vmatprep.subr.bf16.mxu0 0
    %195 = vmatpush2.bf16.msra.mxu0 %v149
    %196 = vmatprep.subr.bf16.mxu0 0
    %197 = vmatpush2.bf16.msra.mxu0 %v148
    %198 = vmatprep.subr.bf16.mxu0 0
    %199 = vmatpush2.bf16.msra.mxu0 %v147
    %200 = vmatprep.subr.bf16.mxu0 0
    %201 = vmatpush2.bf16.msra.mxu0 %v146
    %202 = vmatprep.mubr.bf16.mxu0 %v34
    %203 = vmatmul.mubr.bf16.gmra.mxu0 %v33
    %v204 = vpop.f32.mrf.mxu0
    %v205 = vadd.f32 %v72, %v204
    %v206 = vpop.f32.mrf.mxu0
    %v207 = vpop.f32.mrf.mxu0
    %v208 = vadd.f32 %v72, %v207
    %v209 = vpop.f32.mrf.mxu0
    %210 = vdwg.mxu0
    %v211 = vmax.f32 %v205, 0.0
    %v212 = vmax.f32 %v208, 0.0
    %213 = vst [vmem:[%s3] sm:$0xff] %v211
    %214 = vst [vmem:[%s3 + $0x8] sm:$0xff] %v212
    // Predicated region
    $region18: #{_textnn_forward_impl.1} parent=1 // pred_check
      _
    $region19: #{_textnn_forward_impl.1} parent=1 // pred_check_branch
      %216 = sbr.rel (0) target = $region21
    $region20: #{_textnn_forward_impl.1} parent=1 // pred_region
      _
    $region21: #{_textnn_forward_impl.1} parent=1 // pred_fallthru
      _
    // Predicated region
    $region22: #{_textnn_forward_impl.1} parent=1 // pred_check
      _
    $region23: #{_textnn_forward_impl.1} parent=1 // pred_check_branch
      %218 = sbr.rel (0) target = $region25
    $region24: #{_textnn_forward_impl.1} parent=1 // pred_region
      _
    $region25: #{_textnn_forward_impl.1} parent=1 // pred_fallthru
      _
    %219 = vsyncpa [#allocation3], 1

</llo_original>
